<compile_context>
chip_gen: v7x
topology: tpu7x:2x2x1
jax: 0.10.0
libtpu: 0.0.40
codegen_flags: <defaults>
</compile_context>

<pallas_src>
import jax
import jax.numpy as jnp
from jax.experimental import pallas as pl
from jax.experimental.pallas import tpu as pltpu


_LANE = 128
_MIN_PALLAS_BATCH = _LANE  # below this, plain fused XLA beats kernel launch overhead


def _round_up(x: int, m: int) -> int:
    return (x + m - 1) // m * m


def _choose_batch_tile(batch: int, emb: int,
                       vmem_budget_bytes: int = 8 << 20,
                       cap: int = 512) -> int:
    """Largest batch tile (multiple of 128, <= cap) whose double-buffered
    [TB, E] f32 block stays inside a conservative VMEM budget.

    Dominant VMEM user is the pipelined input tile: 2 buffers * TB * E * 4 B.
    An 8 MiB budget leaves ample headroom under every generation's scoped
    default (16 MiB v5e, 32 MiB v6e, 32 MiB-of-64 MiB v7x), so no explicit
    vmem_limit_bytes is needed.  cap=512 rows already reaches ~85% of the HBM
    roofline for streaming kernels.
    """
    by_vmem = vmem_budget_bytes // (2 * 4 * max(emb, 1))
    tb = min(cap, by_vmem, _round_up(batch, _LANE))
    return max(_LANE, (tb // _LANE) * _LANE)


# ----------------------------------------------------------------------------
# prior(): Gaussian kernel exp(-slope * ||rel_b - head||^2) -> [B]
# ----------------------------------------------------------------------------
def _gaussian_prior_kernel(slope_ref, rel_ref, head_ref, out_ref):
    # slope_ref: SMEM (1, 1) f32    rel_ref: [TB, E]    head_ref: [1, E]
    # out_ref:   [1, TB]  (lane-dense row of the (1, B) output)
    slope = slope_ref[0, 0]
    diff = rel_ref[...].astype(jnp.float32) - head_ref[...].astype(jnp.float32)
    l2 = jnp.sum(diff * diff, axis=-1, keepdims=True)      # [TB, 1] lane reduce (XLU)
    row = jnp.transpose(l2, (1, 0))                         # [1, TB] XLU transpose
    out_ref[...] = jnp.exp(-slope * row)                    # EUP exp, lane-dense store


def pallas_gaussian_prior(rel: jax.Array, head: jax.Array, slope: float) -> jax.Array:
    """exp(-slope * ||rel_b - head||_2^2) for every batch row, flattened to [B]."""
    B, E = rel.shape
    assert head.shape == (1, E)

    if B < _MIN_PALLAS_BATCH:
        # Tiny problem: per-step/launch overhead dwarfs compute -> fused XLA.
        d = rel.astype(jnp.float32) - head.astype(jnp.float32)
        return jnp.exp(-jnp.float32(slope) * jnp.sum(d * d, axis=-1)).reshape(-1)

    tb = _choose_batch_tile(B, E)
    grid = (pl.cdiv(B, tb),)                 # ragged last block: OOB writes are masked
    slope_arr = jnp.full((1, 1), slope, dtype=jnp.float32)

    out = pl.pallas_call(
        _gaussian_prior_kernel,
        out_shape=jax.ShapeDtypeStruct((1, B), jnp.float32),
        grid_spec=pltpu.PrefetchScalarGridSpec(
            num_scalar_prefetch=0,
            grid=grid,
            in_specs=[
                pl.BlockSpec(memory_space=pltpu.MemorySpace.SMEM),  # slope scalar
                pl.BlockSpec((tb, E), lambda i: (i, 0)),            # rel batch tile
                pl.BlockSpec((1, E), lambda i: (0, 0)),             # head, VMEM-resident
            ],
            out_specs=pl.BlockSpec((1, tb), lambda i: (0, i)),      # lane-dense row
        ),
        compiler_params=pltpu.CompilerParams(
            dimension_semantics=("parallel",)),                      # dual-TC on v7x
    )(slope_arr, rel, head)
    return out.reshape(-1)                   # .view(-1) equivalent (metadata only)


# ----------------------------------------------------------------------------
# forward(): memory.repeat(batch, 1) for each [1, E] memory -> [B, E]
# ----------------------------------------------------------------------------
def _repeat_kernel(mem_ref, out_ref):
    # mem_ref: [1, E]  (same block every grid step -> loaded into VMEM once)
    # out_ref: [TB, E]
    out_ref[...] = jnp.broadcast_to(mem_ref[...], out_ref.shape).astype(out_ref.dtype)


def pallas_repeat(memory: jax.Array, batch: int) -> jax.Array:
    """Materialize memory ([1, E]) repeated to [batch, E] (torch .repeat semantics)."""
    one, E = memory.shape
    assert one == 1

    if batch < _MIN_PALLAS_BATCH:
        # Lazy/fused broadcast; no point launching a kernel for a few rows.
        return jnp.broadcast_to(memory, (batch, E))

    tb = _choose_batch_tile(batch, E)
    grid = (pl.cdiv(batch, tb),)
    return pl.pallas_call(
        _repeat_kernel,
        out_shape=jax.ShapeDtypeStruct((batch, E), memory.dtype),
        grid_spec=pltpu.PrefetchScalarGridSpec(
            num_scalar_prefetch=0,
            grid=grid,
            in_specs=[pl.BlockSpec((1, E), lambda i: (0, 0))],   # memory resident
            out_specs=pl.BlockSpec((tb, E), lambda i: (i, 0)),
        ),
        compiler_params=pltpu.CompilerParams(
            dimension_semantics=("parallel",)),
    )(memory)


# ----------------------------------------------------------------------------
# Module-equivalent container
# ----------------------------------------------------------------------------
class NTPReformulatorPallas:
    """JAX/Pallas equivalent of ctp NTPReformulator with a Gaussian base kernel."""

    def __init__(self, nb_hops: int, embedding_size: int, slope: float = 1.0, *,
                 key, lower_bound: float = -1.0, upper_bound: float = 1.0):
        self.nb_hops = nb_hops
        self.embedding_size = embedding_size
        self.slope = float(slope)
        keys = jax.random.split(key, nb_hops + 1)
        # StaticReformulator._param(1, embedding_size) with 'uniform' init.
        self.memory_lst = [
            jax.random.uniform(keys[h], (1, embedding_size), jnp.float32,
                               lower_bound, upper_bound)
            for h in range(nb_hops)
        ]
        self.head = jax.random.uniform(keys[-1], (1, embedding_size), jnp.float32,
                                       lower_bound, upper_bound)

    def forward(self, rel: jax.Array):
        batch = rel.shape[0]
        return [pallas_repeat(memory, batch) for memory in self.memory_lst]

    def prior(self, rel: jax.Array) -> jax.Array:
        return pallas_gaussian_prior(rel, self.head, self.slope)


# ----------------------------------------------------------------------------
# Main
# ----------------------------------------------------------------------------
if __name__ == "__main__":
    # Small (256 KiB) but large enough to exercise the tiled Pallas path:
    # B = 1024 -> two 512-row batch tiles per kernel; E = 64 on the lane axis.
    B, E, HOPS = 1024, 64, 2
    key = jax.random.PRNGKey(0)
    k_rel, k_mod = jax.random.split(key)
    rel = jax.random.normal(k_rel, (B, E), dtype=jnp.float32)

    module = NTPReformulatorPallas(nb_hops=HOPS, embedding_size=E, slope=1.0, key=k_mod)

    # forward(): each [1, E] memory repeated to [B, E].
    body = [jax.block_until_ready(t) for t in module.forward(rel)]
    for got, memory in zip(body, module.memory_lst):
        assert got.shape == (B, E)
        assert jnp.allclose(got, jnp.broadcast_to(memory, (B, E))), "forward() mismatch"

    # prior(): Gaussian kernel against the single head row, flattened to [B].
    pri = jax.block_until_ready(module.prior(rel))
    ref = jnp.exp(-module.slope * jnp.sum((rel - module.head) ** 2, axis=-1)).reshape(-1)
    assert pri.shape == (B,)
    assert jnp.allclose(pri, ref, atol=1e-5, rtol=1e-5), "prior() mismatch"

    # Tiny-batch fallback path (no Pallas launch; fixed overhead would dominate).
    small = rel[:4]
    pri_small = jax.block_until_ready(module.prior(small))
    ref_small = jnp.exp(-module.slope *
                        jnp.sum((small - module.head) ** 2, axis=-1)).reshape(-1)
    assert jnp.allclose(pri_small, ref_small, atol=1e-5, rtol=1e-5)

    print("KERNEL_OK")
</pallas_src>

<mosaic_0001>
module attributes {stable_mosaic.version = 11 : i64} {
  func.func @_repeat_kernel(%arg0: i32, %arg1: memref<1x64xf32, #tpu.memory_space<vmem>>, %arg2: memref<512x64xf32, #tpu.memory_space<vmem>>) attributes {dimension_semantics = [#tpu.dimension_semantics<parallel>], iteration_bounds = array<i64: 2>, scalar_prefetch = 0 : i64, scratch_operands = 0 : i64, tpu.core_type = #tpu.core_type<tc>, window_params = [{pipeline_mode = #tpu.pipeline_mode<synchronous>, transform_indices = @transform_0, window_bounds = array<i64: 1, 64>}, {transform_indices = @transform_1, window_bounds = array<i64: 512, 64>}]} {
    %c0 = arith.constant 0 : index
    %c0_0 = arith.constant 0 : index
    %0 = vector.load %arg1[%c0, %c0_0] : memref<1x64xf32, #tpu.memory_space<vmem>>, vector<1x64xf32>
    %1 = vector.shape_cast %0 : vector<1x64xf32> to vector<1x64xf32>
    %2 = vector.broadcast %1 : vector<1x64xf32> to vector<512x64xf32>
    %c0_1 = arith.constant 0 : index
    %c0_2 = arith.constant 0 : index
    %3 = vector.load %arg2[%c0_1, %c0_2] : memref<512x64xf32, #tpu.memory_space<vmem>>, vector<512x64xf32>
    tpu.vector_store %arg2[%c0_1, %c0_2], %2 {strides = array<i32>} : memref<512x64xf32, #tpu.memory_space<vmem>>, vector<512x64xf32>,
    return
  }
  func.func @transform_0(%arg0: i32) -> (i32, i32) {
    %c0_i32 = arith.constant 0 : i32
    %c0_i32_0 = arith.constant 0 : i32
    %c0_i32_1 = arith.constant 0 : i32
    return %c0_i32, %c0_i32_0 : i32, i32
  }
  func.func @transform_1(%arg0: i32) -> (i32, i32) {
    %c0_i32 = arith.constant 0 : i32
    %c0_i32_0 = arith.constant 0 : i32
    return %arg0, %c0_i32 : i32, i32
  }
}

</mosaic_0001>

<llo_original>
// kernel: tpu_custom_call.1
$region0: #{tpu_custom_call.1}
  #allocation0 [shape = 'u32[]', space=smem, size = 0x4, offset = 0x4, fixed_abs, tag = 'smem constant byte address 0x4 - core index']
  #allocation1 [shape = 'u32[144,128]{1,0:T(1,128)}', space=vmem, size = 0x12000, scoped, tag = 'internal scratch']
  %s0 = inlined_call_operand.hbm [shape: f32[1,64], index: 0, kind: input, shape index: {}]
  %s1 = inlined_call_operand.vmem [shape: f32[1024,64], index: 1, kind: output, shape index: {}]
  %s2 = sld [smem:[#allocation0]]
  $region41: #{tpu_custom_call.1} parent=0
    _
  %s4 = ssub.s32 1, %s2
  %s5 = scalar_select 0, %s4, %s2
  $region1: #{tpu_custom_call.1} parent=0
    #allocation2 [shape = 'u8[512]{0}', space=vmem, size = 0x400, scoped, tag = 'input window, operand 0, single buffered']
    #allocation3 [shape = 's32[2]{0}', space=sflag, size = 0x8, scoped, tag = 'scoped memory for tpu_custom_call.1']
    %6 = vsyncpa [#allocation3], 0
    loop: start=0, step=1, limit=4
    $region2: #{tpu_custom_call.1} parent=1 // loop_pre_header
      _
    $region3: #{tpu_custom_call.1} parent=1 // loop_header
      %s8 = sphi 0, %s12
      %p9 = scmp.ge.s32.totalorder %s8, 4
      %s16 = sphi 0, %s16
      %s18 = sphi 0, %s16
      %s19 = sphi 0, %s18
      %s33 = sphi 0, %s19
      %s39 = sphi 0, %s41
      %s42 = sphi 0, %s39
      %s43 = sphi 0, %s42
      %s59 = sphi 0, %s43
    $region4: #{tpu_custom_call.1} parent=1 // loop_header_branch
      %11 = sbr.rel (%p9) target = $region8
    $region5: #{tpu_custom_call.1} parent=1 // loop_body
      %s13 = ssub.s32 %s8, 1
      %s14 = ssub.s32 %s8, 2
      %s15 = sadd.s32 %s8, 1
      %s17 = sadd.s32 %s16, 1
      %p20 = scmp.eq.s32.totalorder %s8, 1
      %p21 = scmp.ne.s32.totalorder %s16, %s18
      %p22 = scmp.eq.s32.totalorder %s8, 0
      %p23 = por %p21, %p22
      %p24 = scmp.ne.s32.totalorder %s16, %s18
      %p25 = scmp.eq.s32.totalorder %s13, 1
      %p26 = por %p24, %p25
      %p27 = scmp.ne.s32.totalorder %s18, %s19
      %p28 = scmp.eq.s32.totalorder %s13, 0
      %p29 = por %p27, %p28
      %p30 = scmp.ne.s32.totalorder %s18, %s19
      %p31 = scmp.eq.s32.totalorder %s14, 1
      %p32 = por %p30, %p31
      %p34 = scmp.ne.s32.totalorder %s19, %s33
      %p35 = scmp.eq.s32.totalorder %s14, 0
      %p36 = por %p34, %p35
      %s37 = ssub.s32 %s8, %s15
      %p38 = scmp.eq.s32.totalorder %s37, 0
      %s40 = sadd.s32 %s39, 1
      %s41 = scalar_select %p38, %s39, %s40
      %p44 = pneg %p38
      %p45 = scmp.eq.s32.totalorder %s8, 1
      %p46 = por %p44, %p45
      %p47 = scmp.ne.s32.totalorder %s39, %s42
      %p48 = scmp.eq.s32.totalorder %s8, 0
      %p49 = por %p47, %p48
      %p50 = scmp.ne.s32.totalorder %s39, %s42
      %p51 = scmp.eq.s32.totalorder %s13, 1
      %p52 = por %p50, %p51
      %p53 = scmp.ne.s32.totalorder %s42, %s43
      %p54 = scmp.eq.s32.totalorder %s13, 0
      %p55 = por %p53, %p54
      %p56 = scmp.ne.s32.totalorder %s42, %s43
      %p57 = scmp.eq.s32.totalorder %s14, 1
      %p58 = por %p56, %p57
      %p60 = scmp.ne.s32.totalorder %s43, %s59
      %p61 = scmp.eq.s32.totalorder %s14, 0
      %p62 = por %p60, %p61
      %p63 = scmp.le.s32.totalorder 1, %s8
      %p64 = scmp.lt.s32.totalorder %s8, 3
      %p65 = pnand %p63, %p64
      %p66 = pneg %p65
      // Predicated region
      $region9: #{tpu_custom_call.1} parent=5 // pred_check
        _
      $region10: #{tpu_custom_call.1} parent=5 // pred_check_branch
        %68 = sbr.rel (%p65) target = $region12
      $region11: #{tpu_custom_call.1} parent=5 // pred_region
        %s69 = ssub.s32 %s8, 1
        // Predicated region
        $region13: #{tpu_custom_call.1} parent=11 // pred_check
          %p70 = pneg %p29
        $region14: #{tpu_custom_call.1} parent=11 // pred_check_branch
          %72 = sbr.rel (%p70) target = $region16
        $region15: #{tpu_custom_call.1} parent=11 // pred_region
          %s74 = ssub.s32 16, 16
          %75 = vsyncadd [#allocation3], %s74
          %s77 = sshll.u32 [#allocation2], 4
          %s78 = int_to_ptr.vmem [resolvable:$true] %s77
          %80 = dma.hbm_to_vmem [thread:$0]  %s0, 16, %s78, [#allocation3]
        $region16: #{tpu_custom_call.1} parent=11 // pred_fallthru
          _
      $region12: #{tpu_custom_call.1} parent=5 // pred_fallthru
        _
      %p81 = scmp.lt.s32.totalorder %s8, 2
      // Predicated region
      $region17: #{tpu_custom_call.1} parent=5 // pred_check
        %p82 = pneg %p81
      $region18: #{tpu_custom_call.1} parent=5 // pred_check_branch
        %84 = sbr.rel (%p82) target = $region20
      $region19: #{tpu_custom_call.1} parent=5 // pred_region
        _
      $region20: #{tpu_custom_call.1} parent=5 // pred_fallthru
        _
      %p85 = scmp.le.s32.totalorder 1, %s8
      %p86 = scmp.lt.s32.totalorder %s8, 3
      %p87 = pnand %p85, %p86
      %p88 = pneg %p87
      // Predicated region
      $region21: #{tpu_custom_call.1} parent=5 // pred_check
        _
      $region22: #{tpu_custom_call.1} parent=5 // pred_check_branch
        %90 = sbr.rel (%p87) target = $region24
      $region23: #{tpu_custom_call.1} parent=5 // pred_region
        %s91 = ssub.s32 %s8, 1
        // Predicated region
        $region25: #{tpu_custom_call.1} parent=23 // pred_check
          %p92 = pneg %p29
        $region26: #{tpu_custom_call.1} parent=23 // pred_check_branch
          %94 = sbr.rel (%p92) target = $region28
        $region27: #{tpu_custom_call.1} parent=23 // pred_region
          %95 = dma.done [#allocation3], 16
        $region28: #{tpu_custom_call.1} parent=23 // pred_fallthru
          _
        %p96 = pneg %p29
        %p97 = pneg %p26
        %p98 = pneg %p55
        %p99 = pneg %p52
        %s100 = smul.u32 64, %s13
        %p101 = scmp.lt.s32.totalorder %s100, 127
        %s102 = scalar_select %p101, %s100, 127
        %s103 = smul.addr %s102, 8
        %s104 = scalar_lea.vmem %s1, %s103
        %s105 = smul.u32 64, %s13
        %p106 = scmp.lt.s32.totalorder %s105, 127
        %s107 = scalar_select %p106, %s105, 127
        %s108 = smul.addr %s107, 8
        %s109 = scalar_lea.vmem %s1, %s108
        %s110 = smul.u32 64, %s13
        %v111 = vld [vmem:[#allocation2] sm:$0x1]
        %v113 = vlaneseq
        %v114 = vshrl.u32 %v113, 7
        %v115 = vsub.s32 0, %v114
        %v116 = vrot.slane %v111, %v115
        %vm118 = vcmask 523264
        %119 = vst.msk [vmem:[%s109] sm:$0xff] %vm118, %v116
        %120 = vst.msk [vmem:[%s109 + $0x8] sm:$0xff] %vm118, %v116
        %121 = vst.msk [vmem:[%s109 + $0x10] sm:$0xff] %vm118, %v116
        %122 = vst.msk [vmem:[%s109 + $0x18] sm:$0xff] %vm118, %v116
        %123 = vst.msk [vmem:[%s109 + $0x20] sm:$0xff] %vm118, %v116
        %124 = vst.msk [vmem:[%s109 + $0x28] sm:$0xff] %vm118, %v116
        %125 = vst.msk [vmem:[%s109 + $0x30] sm:$0xff] %vm118, %v116
        %126 = vst.msk [vmem:[%s109 + $0x38] sm:$0xff] %vm118, %v116
        %127 = vst.msk [vmem:[%s109 + $0x40] sm:$0xff] %vm118, %v116
        %128 = vst.msk [vmem:[%s109 + $0x48] sm:$0xff] %vm118, %v116
        %129 = vst.msk [vmem:[%s109 + $0x50] sm:$0xff] %vm118, %v116
        %130 = vst.msk [vmem:[%s109 + $0x58] sm:$0xff] %vm118, %v116
        %131 = vst.msk [vmem:[%s109 + $0x60] sm:$0xff] %vm118, %v116
        %132 = vst.msk [vmem:[%s109 + $0x68] sm:$0xff] %vm118, %v116
        %133 = vst.msk [vmem:[%s109 + $0x70] sm:$0xff] %vm118, %v116
        %134 = vst.msk [vmem:[%s109 + $0x78] sm:$0xff] %vm118, %v116
        %135 = vst.msk [vmem:[%s109 + $0x80] sm:$0xff] %vm118, %v116
        %136 = vst.msk [vmem:[%s109 + $0x88] sm:$0xff] %vm118, %v116
        %137 = vst.msk [vmem:[%s109 + $0x90] sm:$0xff] %vm118, %v116
        %138 = vst.msk [vmem:[%s109 + $0x98] sm:$0xff] %vm118, %v116
        %139 = vst.msk [vmem:[%s109 + $0xa0] sm:$0xff] %vm118, %v116
        %140 = vst.msk [vmem:[%s109 + $0xa8] sm:$0xff] %vm118, %v116
        %141 = vst.msk [vmem:[%s109 + $0xb0] sm:$0xff] %vm118, %v116
        %142 = vst.msk [vmem:[%s109 + $0xb8] sm:$0xff] %vm118, %v116
        %143 = vst.msk [vmem:[%s109 + $0xc0] sm:$0xff] %vm118, %v116
        %144 = vst.msk [vmem:[%s109 + $0xc8] sm:$0xff] %vm118, %v116
        %145 = vst.msk [vmem:[%s109 + $0xd0] sm:$0xff] %vm118, %v116
        %146 = vst.msk [vmem:[%s109 + $0xd8] sm:$0xff] %vm118, %v116
        %147 = vst.msk [vmem:[%s109 + $0xe0] sm:$0xff] %vm118, %v116
        %148 = vst.msk [vmem:[%s109 + $0xe8] sm:$0xff] %vm118, %v116
        %149 = vst.msk [vmem:[%s109 + $0xf0] sm:$0xff] %vm118, %v116
        %150 = vst.msk [vmem:[%s109 + $0xf8] sm:$0xff] %vm118, %v116
        %151 = vst.msk [vmem:[%s109 + $0x100] sm:$0xff] %vm118, %v116
        %152 = vst.msk [vmem:[%s109 + $0x108] sm:$0xff] %vm118, %v116
        %153 = vst.msk [vmem:[%s109 + $0x110] sm:$0xff] %vm118, %v116
        %154 = vst.msk [vmem:[%s109 + $0x118] sm:$0xff] %vm118, %v116
        %155 = vst.msk [vmem:[%s109 + $0x120] sm:$0xff] %vm118, %v116
        %156 = vst.msk [vmem:[%s109 + $0x128] sm:$0xff] %vm118, %v116
        %157 = vst.msk [vmem:[%s109 + $0x130] sm:$0xff] %vm118, %v116
        %158 = vst.msk [vmem:[%s109 + $0x138] sm:$0xff] %vm118, %v116
        %159 = vst.msk [vmem:[%s109 + $0x140] sm:$0xff] %vm118, %v116
        %160 = vst.msk [vmem:[%s109 + $0x148] sm:$0xff] %vm118, %v116
        %161 = vst.msk [vmem:[%s109 + $0x150] sm:$0xff] %vm118, %v116
        %162 = vst.msk [vmem:[%s109 + $0x158] sm:$0xff] %vm118, %v116
        %163 = vst.msk [vmem:[%s109 + $0x160] sm:$0xff] %vm118, %v116
        %164 = vst.msk [vmem:[%s109 + $0x168] sm:$0xff] %vm118, %v116
        %165 = vst.msk [vmem:[%s109 + $0x170] sm:$0xff] %vm118, %v116
        %166 = vst.msk [vmem:[%s109 + $0x178] sm:$0xff] %vm118, %v116
        %167 = vst.msk [vmem:[%s109 + $0x180] sm:$0xff] %vm118, %v116
        %168 = vst.msk [vmem:[%s109 + $0x188] sm:$0xff] %vm118, %v116
        %169 = vst.msk [vmem:[%s109 + $0x190] sm:$0xff] %vm118, %v116
        %170 = vst.msk [vmem:[%s109 + $0x198] sm:$0xff] %vm118, %v116
        %171 = vst.msk [vmem:[%s109 + $0x1a0] sm:$0xff] %vm118, %v116
        %172 = vst.msk [vmem:[%s109 + $0x1a8] sm:$0xff] %vm118, %v116
        %173 = vst.msk [vmem:[%s109 + $0x1b0] sm:$0xff] %vm118, %v116
        %174 = vst.msk [vmem:[%s109 + $0x1b8] sm:$0xff] %vm118, %v116
        %175 = vst.msk [vmem:[%s109 + $0x1c0] sm:$0xff] %vm118, %v116
        %176 = vst.msk [vmem:[%s109 + $0x1c8] sm:$0xff] %vm118, %v116
        %177 = vst.msk [vmem:[%s109 + $0x1d0] sm:$0xff] %vm118, %v116
        %178 = vst.msk [vmem:[%s109 + $0x1d8] sm:$0xff] %vm118, %v116
        %179 = vst.msk [vmem:[%s109 + $0x1e0] sm:$0xff] %vm118, %v116
        %180 = vst.msk [vmem:[%s109 + $0x1e8] sm:$0xff] %vm118, %v116
        %181 = vst.msk [vmem:[%s109 + $0x1f0] sm:$0xff] %vm118, %v116
        %182 = vst.msk [vmem:[%s109 + $0x1f8] sm:$0xff] %vm118, %v116
        %s183 = smul.u32 64, %s13
        %p184 = scmp.lt.s32.totalorder %s183, 127
        %s185 = scalar_select %p184, %s183, 127
        %s186 = smul.addr %s185, 8
        %s187 = scalar_lea.vmem %s1, %s186
        // Predicated region
        $region29: #{tpu_custom_call.1} parent=23 // pred_check
          %p188 = pneg %p52
        $region30: #{tpu_custom_call.1} parent=23 // pred_check_branch
          %190 = sbr.rel (%p188) target = $region32
        $region31: #{tpu_custom_call.1} parent=23 // pred_region
          %s191 = smul.u32 64, %s13
        $region32: #{tpu_custom_call.1} parent=23 // pred_fallthru
          _
      $region24: #{tpu_custom_call.1} parent=5 // pred_fallthru
        _
      %p192 = scmp.le.s32.totalorder 2, %s8
      // Predicated region
      $region33: #{tpu_custom_call.1} parent=5 // pred_check
        %p193 = pneg %p192
      $region34: #{tpu_custom_call.1} parent=5 // pred_check_branch
        %195 = sbr.rel (%p193) target = $region36
      $region35: #{tpu_custom_call.1} parent=5 // pred_region
        %s196 = ssub.s32 %s8, 2
        // Predicated region
        $region37: #{tpu_custom_call.1} parent=35 // pred_check
          %p197 = pneg %p58
        $region38: #{tpu_custom_call.1} parent=35 // pred_check_branch
          %199 = sbr.rel (%p197) target = $region40
        $region39: #{tpu_custom_call.1} parent=35 // pred_region
          %s200 = smul.u32 64, %s14
          %p201 = scmp.lt.s32.totalorder %s200, 127
          %s202 = scalar_select %p201, %s200, 127
          %s203 = smul.addr %s202, 8
          %s204 = scalar_lea.vmem %s1, %s203
        $region40: #{tpu_custom_call.1} parent=35 // pred_fallthru
          _
      $region36: #{tpu_custom_call.1} parent=5 // pred_fallthru
        _
    $region6: #{tpu_custom_call.1} parent=1 // loop_footer
      %s12 = sadd.s32 1, %s8
    $region7: #{tpu_custom_call.1} parent=1 // loop_footer_branch
      %7 = sbr.rel target = $region3
    $region8: #{tpu_custom_call.1} parent=1 // loop_exit
      _
    %205 = vsyncpa [#allocation3], 1
    %s206 = scalar_lea.sflag [#allocation3], 1
    %207 = vsyncpa %s206, 1

</llo_original>
